<compile_context>
chip_gen: v7x
topology: tpu7x:2x2x1
jax: 0.10.0
libtpu: 0.0.40
codegen_flags: <defaults>
</compile_context>

<pallas_src>
import functools

import jax
import jax.numpy as jnp
from jax.experimental import pallas as pl
from jax.experimental.pallas import tpu as pltpu

_LANES = 128


def _dice_sums_kernel(p_ref, t_ref, out_ref, *, use_sigmoid, naive_dice,
                      needs_mask, valid_n, block_elems):
    """One grid step over a (B, TR, 128) slab of pred/target.

    out_ref : (1, 3, B, 128) partial sums over the TR (sublane) axis:
      [0] sum(p*t)   [1] sum(p*p) (or sum(p))   [2] sum(t*t) (or sum(t))
    """
    k = pl.program_id(0)

    def compute(apply_mask):
        p = p_ref[...].astype(jnp.float32)
        t = t_ref[...].astype(jnp.float32)
        if use_sigmoid:
            # Single EUP transcendental (tanh) instead of exp + full divide.
            p = 0.5 * (jnp.tanh(0.5 * p) + 1.0)
        if apply_mask:
            shape = p.shape  # (B, TR, 128)
            row = jax.lax.broadcasted_iota(jnp.int32, shape, 1)
            lane = jax.lax.broadcasted_iota(jnp.int32, shape, 2)
            idx = k * block_elems + row * _LANES + lane
            keep = idx < valid_n
            zero = jnp.float32(0.0)
            p = jnp.where(keep, p, zero)   # post-sigmoid so padded p is exactly 0
            t = jnp.where(keep, t, zero)
        out_ref[0, 0, :, :] = jnp.sum(p * t, axis=1)
        if naive_dice:
            out_ref[0, 1, :, :] = jnp.sum(p, axis=1)
            out_ref[0, 2, :, :] = jnp.sum(t, axis=1)
        else:
            out_ref[0, 1, :, :] = jnp.sum(p * p, axis=1)
            out_ref[0, 2, :, :] = jnp.sum(t * t, axis=1)

    if needs_mask:
        is_last = k == pl.num_programs(0) - 1

        @pl.when(is_last)
        def _():
            compute(True)

        @pl.when(jnp.logical_not(is_last))
        def _():
            compute(False)
    else:
        compute(False)


def _vmem_capacity_bytes():
    try:
        info = pltpu.get_tpu_info()
        cap = getattr(info, "vmem_capacity_bytes", None)
        if cap:
            return int(cap)
    except Exception:
        pass
    return 64 << 20  # conservative default (v7x per-TensorCore VMEM)


def dice_loss_pallas(pred, target, *, use_sigmoid=True, naive_dice=False, eps=1e-3):
    """Pallas implementation of DiceLoss.forward (mean-reduced scalar loss)."""
    B = pred.shape[0]

    # DiceLoss.forward resizes target to pred's spatial size if they differ.
    if pred.ndim == 4 and target.ndim == 4 and pred.shape[2:] != target.shape[2:]:
        # antialias=False + half-pixel centers ~ torch F.interpolate(align_corners=False).
        # TODO(synk): exact bit-level parity with torch bilinear is not guaranteed.
        target = jax.image.resize(target.astype(jnp.float32), pred.shape,
                                  method="bilinear", antialias=False)

    p = pred.reshape(B, -1)          # native dtype, metadata-only reshape
    t = target.reshape(B, -1)
    n = p.shape[1]

    # Lane-dense layout (B, nr, 128). If N is not a multiple of 128, pad the
    # flat arrays to the next multiple of 128 only (rare fallback); the
    # in-kernel tail mask makes the fill value irrelevant.
    # TODO(synk): the lane-pad fallback costs one extra HBM pass over the inputs.
    nr = pl.cdiv(n, _LANES)
    n128 = nr * _LANES
    if n128 != n:
        p = jnp.pad(p, ((0, 0), (0, n128 - n)))
        t = jnp.pad(t, ((0, 0), (0, n128 - n)))
    p3 = p.reshape(B, nr, _LANES)
    t3 = t.reshape(B, nr, _LANES)

    # Block sizing: ~8 MiB of input data per grid step (both inputs combined,
    # native dtype), capped by an explicit generation-aware VMEM budget
    # (2 inputs x 2 pipeline buffers + double-buffered fused output).
    in_itemsize = p3.dtype.itemsize + t3.dtype.itemsize
    row_bytes = B * _LANES * in_itemsize
    out_block_bytes = 3 * B * _LANES * 4
    vmem_budget = min((_vmem_capacity_bytes() * 3) // 4, 100 << 20)
    tr_bytes = max(8, (8 << 20) // row_bytes)
    tr_vmem = max(8, (vmem_budget - 2 * out_block_bytes) // (2 * row_bytes))
    tr = min(nr, tr_bytes, tr_vmem)
    if tr < nr:
        tr = max(8, (tr // 8) * 8)      # sublane-aligned when not the full axis
    num_chunks = pl.cdiv(nr, tr)

    block_elems = tr * _LANES
    needs_mask = (num_chunks * block_elems) != n   # ragged tail in the last block

    kernel = functools.partial(
        _dice_sums_kernel, use_sigmoid=use_sigmoid, naive_dice=naive_dice,
        needs_mask=needs_mask, valid_n=n, block_elems=block_elems)

    in_spec = pl.BlockSpec((B, tr, _LANES), lambda k: (0, k, 0))
    out_spec = pl.BlockSpec((1, 3, B, _LANES), lambda k: (k, 0, 0, 0))

    sums = pl.pallas_call(
        kernel,
        out_shape=jax.ShapeDtypeStruct((num_chunks, 3, B, _LANES), jnp.float32),
        grid=(num_chunks,),
        in_specs=[in_spec, in_spec],
        out_specs=out_spec,
        compiler_params=pltpu.CompilerParams(
            dimension_semantics=("parallel",),
            vmem_limit_bytes=int(vmem_budget)),
    )(p3, t3)

    # Tiny cross-chunk / cross-lane reductions + scalar dice math in plain JAX.
    totals = jnp.sum(sums, axis=(0, 3))      # (3, B)
    a, b, c = totals[0], totals[1], totals[2]
    if naive_dice:
        d = (2.0 * a + eps) / (b + c + eps)
    else:
        d = 2.0 * a / ((b + eps) + (c + eps))
    return jnp.mean(1.0 - d)


def dice_loss_ref(pred, target, *, use_sigmoid=True, naive_dice=False, eps=1e-3):
    """Pure-JAX reference mirroring the PyTorch code."""
    if pred.ndim == 4 and target.ndim == 4 and pred.shape[2:] != target.shape[2:]:
        target = jax.image.resize(target.astype(jnp.float32), pred.shape,
                                  method="bilinear", antialias=False)
    p = pred.reshape(pred.shape[0], -1).astype(jnp.float32)
    if use_sigmoid:
        p = jax.nn.sigmoid(p)
    t = target.reshape(target.shape[0], -1).astype(jnp.float32)
    a = jnp.sum(p * t, axis=1)
    if naive_dice:
        d = (2.0 * a + eps) / (jnp.sum(p, axis=1) + jnp.sum(t, axis=1) + eps)
    else:
        d = 2.0 * a / (jnp.sum(p * p, axis=1) + eps + jnp.sum(t * t, axis=1) + eps)
    return jnp.mean(1.0 - d)


if __name__ == "__main__":
    key = jax.random.PRNGKey(0)
    k1, k2, k3, k4, k5 = jax.random.split(key, 5)

    # Main case: (bs, c, h, w) exactly as the module expects, f32.
    B, C, H, W = 2, 4, 16, 16
    pred = jax.random.normal(k1, (B, C, H, W), jnp.float32)
    target = (jax.random.uniform(k2, (B, C, H, W)) > 0.5).astype(jnp.float32)
    out = jax.block_until_ready(dice_loss_pallas(pred, target))
    ref = jax.block_until_ready(dice_loss_ref(pred, target))
    assert jnp.allclose(out, ref, rtol=1e-4, atol=1e-6), (out, ref)

    # bf16 inputs: native-dtype path, the cast happens inside the kernel.
    out_bf = jax.block_until_ready(
        dice_loss_pallas(pred.astype(jnp.bfloat16), target.astype(jnp.bfloat16)))
    ref_bf = jax.block_until_ready(
        dice_loss_ref(pred.astype(jnp.bfloat16), target.astype(jnp.bfloat16)))
    assert jnp.allclose(out_bf, ref_bf, rtol=2e-3, atol=1e-5), (out_bf, ref_bf)

    # Ragged feature size (exercises the in-kernel tail mask) + naive_dice.
    B2, C2, H2, W2 = 2, 3, 7, 9
    pred2 = jax.random.normal(k3, (B2, C2, H2, W2), jnp.float32)
    target2 = (jax.random.uniform(k4, (B2, C2, H2, W2)) > 0.5).astype(jnp.float32)
    for naive in (False, True):
        o = jax.block_until_ready(dice_loss_pallas(pred2, target2, naive_dice=naive))
        r = jax.block_until_ready(dice_loss_ref(pred2, target2, naive_dice=naive))
        assert jnp.allclose(o, r, rtol=1e-4, atol=1e-6), (naive, o, r)

    # Target at a different spatial size (exercises the bilinear-resize path).
    target3 = (jax.random.uniform(k5, (B, C, 32, 32)) > 0.5).astype(jnp.float32)
    o = jax.block_until_ready(dice_loss_pallas(pred, target3))
    r = jax.block_until_ready(dice_loss_ref(pred, target3))
    assert jnp.allclose(o, r, rtol=1e-4, atol=1e-6), (o, r)

    print("KERNEL_OK")
</pallas_src>

<mosaic_0001>
module attributes {stable_mosaic.version = 11 : i64} {
  func.func @_dice_sums_kernel(%arg0: i32, %arg1: memref<2x8x128xf32, #tpu.memory_space<vmem>>, %arg2: memref<2x8x128xf32, #tpu.memory_space<vmem>>, %arg3: memref<1x3x2x128xf32, #tpu.memory_space<vmem>>) attributes {dimension_semantics = [#tpu.dimension_semantics<parallel>], iteration_bounds = array<i64: 1>, scalar_prefetch = 0 : i64, scratch_operands = 0 : i64, tpu.core_type = #tpu.core_type<tc>, window_params = [{transform_indices = @transform_0, window_bounds = array<i64: 2, 8, 128>}, {transform_indices = @transform_1, window_bounds = array<i64: 2, 8, 128>}, {transform_indices = @transform_2, window_bounds = array<i64: 1, 3, 2, 128>}]} {
    %c0 = arith.constant 0 : index
    %c0_0 = arith.constant 0 : index
    %c0_1 = arith.constant 0 : index
    %0 = vector.load %arg1[%c0, %c0_0, %c0_1] : memref<2x8x128xf32, #tpu.memory_space<vmem>>, vector<2x8x128xf32>
    %c0_2 = arith.constant 0 : index
    %c0_3 = arith.constant 0 : index
    %c0_4 = arith.constant 0 : index
    %1 = vector.load %arg2[%c0_2, %c0_3, %c0_4] : memref<2x8x128xf32, #tpu.memory_space<vmem>>, vector<2x8x128xf32>
    %cst = arith.constant 5.000000e-01 : f32
    %2 = vector.broadcast %cst : f32 to vector<2x8x128xf32>
    %3 = arith.mulf %2, %0 : vector<2x8x128xf32>
    %4 = math.tanh %3 : vector<2x8x128xf32>
    %cst_5 = arith.constant 1.000000e+00 : f32
    %5 = vector.broadcast %cst_5 : f32 to vector<2x8x128xf32>
    %6 = arith.addf %4, %5 : vector<2x8x128xf32>
    %cst_6 = arith.constant 5.000000e-01 : f32
    %7 = vector.broadcast %cst_6 : f32 to vector<2x8x128xf32>
    %8 = arith.mulf %7, %6 : vector<2x8x128xf32>
    %9 = arith.mulf %8, %1 : vector<2x8x128xf32>
    %cst_7 = arith.constant dense<0.000000e+00> : vector<2x128xf32>
    %10 = vector.multi_reduction <add>, %9, %cst_7 [1] : vector<2x8x128xf32> to vector<2x128xf32>
    %c0_8 = arith.constant 0 : index
    %c0_9 = arith.constant 0 : index
    %c0_10 = arith.constant 0 : index
    %c0_11 = arith.constant 0 : index
    %11 = vector.load %arg3[%c0_8, %c0_9, %c0_10, %c0_11] : memref<1x3x2x128xf32, #tpu.memory_space<vmem>>, vector<1x1x2x128xf32>
    %12 = vector.shape_cast %11 : vector<1x1x2x128xf32> to vector<2x128xf32>
    %13 = vector.shape_cast %10 : vector<2x128xf32> to vector<1x1x2x128xf32>
    tpu.vector_store %arg3[%c0_8, %c0_9, %c0_10, %c0_11], %13 {strides = array<i32>} : memref<1x3x2x128xf32, #tpu.memory_space<vmem>>, vector<1x1x2x128xf32>,
    %14 = arith.mulf %8, %8 : vector<2x8x128xf32>
    %cst_12 = arith.constant dense<0.000000e+00> : vector<2x128xf32>
    %15 = vector.multi_reduction <add>, %14, %cst_12 [1] : vector<2x8x128xf32> to vector<2x128xf32>
    %c0_13 = arith.constant 0 : index
    %c1 = arith.constant 1 : index
    %c0_14 = arith.constant 0 : index
    %c0_15 = arith.constant 0 : index
    %16 = vector.load %arg3[%c0_13, %c1, %c0_14, %c0_15] : memref<1x3x2x128xf32, #tpu.memory_space<vmem>>, vector<1x1x2x128xf32>
    %17 = vector.shape_cast %16 : vector<1x1x2x128xf32> to vector<2x128xf32>
    %18 = vector.shape_cast %15 : vector<2x128xf32> to vector<1x1x2x128xf32>
    tpu.vector_store %arg3[%c0_13, %c1, %c0_14, %c0_15], %18 {strides = array<i32>} : memref<1x3x2x128xf32, #tpu.memory_space<vmem>>, vector<1x1x2x128xf32>,
    %19 = arith.mulf %1, %1 : vector<2x8x128xf32>
    %cst_16 = arith.constant dense<0.000000e+00> : vector<2x128xf32>
    %20 = vector.multi_reduction <add>, %19, %cst_16 [1] : vector<2x8x128xf32> to vector<2x128xf32>
    %c0_17 = arith.constant 0 : index
    %c2 = arith.constant 2 : index
    %c0_18 = arith.constant 0 : index
    %c0_19 = arith.constant 0 : index
    %21 = vector.load %arg3[%c0_17, %c2, %c0_18, %c0_19] : memref<1x3x2x128xf32, #tpu.memory_space<vmem>>, vector<1x1x2x128xf32>
    %22 = vector.shape_cast %21 : vector<1x1x2x128xf32> to vector<2x128xf32>
    %23 = vector.shape_cast %20 : vector<2x128xf32> to vector<1x1x2x128xf32>
    tpu.vector_store %arg3[%c0_17, %c2, %c0_18, %c0_19], %23 {strides = array<i32>} : memref<1x3x2x128xf32, #tpu.memory_space<vmem>>, vector<1x1x2x128xf32>,
    return
  }
  func.func @transform_0(%arg0: i32) -> (i32, i32, i32) {
    %c0_i32 = arith.constant 0 : i32
    %c0_i32_0 = arith.constant 0 : i32
    %c0_i32_1 = arith.constant 0 : i32
    return %c0_i32, %arg0, %c0_i32_0 : i32, i32, i32
  }
  func.func @transform_1(%arg0: i32) -> (i32, i32, i32) {
    %c0_i32 = arith.constant 0 : i32
    %c0_i32_0 = arith.constant 0 : i32
    %c0_i32_1 = arith.constant 0 : i32
    return %c0_i32, %arg0, %c0_i32_0 : i32, i32, i32
  }
  func.func @transform_2(%arg0: i32) -> (i32, i32, i32, i32) {
    %c0_i32 = arith.constant 0 : i32
    %c0_i32_0 = arith.constant 0 : i32
    %c0_i32_1 = arith.constant 0 : i32
    %c0_i32_2 = arith.constant 0 : i32
    return %arg0, %c0_i32, %c0_i32_0, %c0_i32_1 : i32, i32, i32, i32
  }
}

</mosaic_0001>

<llo_original>
// kernel: tpu_custom_call.1
$region0: #{tpu_custom_call.1}
  #allocation0 [shape = 'u32[]', space=smem, size = 0x4, offset = 0x4, fixed_abs, tag = 'smem constant byte address 0x4 - core index']
  #allocation1 [shape = 'u32[144,128]{1,0:T(1,128)}', space=vmem, size = 0x12000, scoped, tag = 'internal scratch']
  %s0 = inlined_call_operand.hbm [shape: f32[2,8,128], index: 0, kind: input, shape index: {}]
  %s1 = inlined_call_operand.hbm [shape: f32[2,8,128], index: 1, kind: input, shape index: {}]
  %s2 = inlined_call_operand.hbm [shape: f32[1,3,2,128], index: 2, kind: output, shape index: {}]
  %s3 = sld [smem:[#allocation0]]
  $region26: #{tpu_custom_call.1} parent=0
    _
  %s5 = ssub.s32 1, %s3
  %s6 = scalar_select 0, %s5, %s3
  $region1: #{tpu_custom_call.1} parent=0
    #allocation2 [shape = 'u8[8192]{0}', space=vmem, size = 0x2000, scoped, tag = 'input window, operand 0, single buffered']
    #allocation3 [shape = 's32[1]{0}', space=sflag, size = 0x4, scoped, tag = 'scoped memory for tpu_custom_call.1']
    #allocation4 [shape = 's32[1]{0}', space=sflag, size = 0x4, scoped, tag = 'scoped memory for tpu_custom_call.1']
    #allocation5 [shape = 'u8[8192]{0}', space=vmem, size = 0x2000, scoped, tag = 'input window, operand 1, single buffered']
    #allocation6 [shape = 's32[1]{0}', space=sflag, size = 0x4, scoped, tag = 'scoped memory for tpu_custom_call.1']
    #allocation7 [shape = 'u8[3072]{0}', space=vmem, size = 0xc00, scoped, tag = 'output window, operand 0, single buffered']
    %7 = vsyncpa [#allocation3], 0
    %8 = vsyncpa [#allocation6], 0
    %9 = vsyncpa [#allocation4], 0
    // Predicated region
    $region2: #{tpu_custom_call.1} parent=1 // pred_check
      _
    $region3: #{tpu_custom_call.1} parent=1 // pred_check_branch
      %11 = sbr.rel (0) target = $region5
    $region4: #{tpu_custom_call.1} parent=1 // pred_region
      %s13 = ssub.s32 256, 256
      %14 = vsyncadd [#allocation3], %s13
      %s15 = sshll.u32 [#allocation2], 4
      %s16 = int_to_ptr.vmem [resolvable:$true] %s15
      %21 = dma.hbm_to_vmem [thread:$0]  %s0, 256, %s16, [#allocation3], 128, 128, 8
    $region5: #{tpu_custom_call.1} parent=1 // pred_fallthru
      _
    // Predicated region
    $region6: #{tpu_custom_call.1} parent=1 // pred_check
      _
    $region7: #{tpu_custom_call.1} parent=1 // pred_check_branch
      %23 = sbr.rel (0) target = $region9
    $region8: #{tpu_custom_call.1} parent=1 // pred_region
      %s25 = ssub.s32 256, 256
      %26 = vsyncadd [#allocation6], %s25
      %s27 = sshll.u32 [#allocation5], 4
      %s28 = int_to_ptr.vmem [resolvable:$true] %s27
      %33 = dma.hbm_to_vmem [thread:$0]  %s1, 256, %s28, [#allocation6], 128, 128, 8
    $region9: #{tpu_custom_call.1} parent=1 // pred_fallthru
      _
    // Predicated region
    $region10: #{tpu_custom_call.1} parent=1 // pred_check
      _
    $region11: #{tpu_custom_call.1} parent=1 // pred_check_branch
      %35 = sbr.rel (0) target = $region13
    $region12: #{tpu_custom_call.1} parent=1 // pred_region
      %36 = dma.done [#allocation3], 256
    $region13: #{tpu_custom_call.1} parent=1 // pred_fallthru
      _
    // Predicated region
    $region14: #{tpu_custom_call.1} parent=1 // pred_check
      _
    $region15: #{tpu_custom_call.1} parent=1 // pred_check_branch
      %38 = sbr.rel (0) target = $region17
    $region16: #{tpu_custom_call.1} parent=1 // pred_region
      %39 = dma.done [#allocation6], 256
    $region17: #{tpu_custom_call.1} parent=1 // pred_fallthru
      _
    %v40 = vld [vmem:[#allocation2] sm:$0xff]
    %v41 = vld [vmem:[#allocation2 + $0x8] sm:$0xff]
    %v42 = vld [vmem:[#allocation5] sm:$0xff]
    %v43 = vld [vmem:[#allocation5 + $0x8] sm:$0xff]
    %v44 = vmul.f32 %v40, 0.5
    %v45 = vmul.f32 %v41, 0.5
    %v46 = vtanh.pop %v44
    %v47 = vtanh.pop %v45
    %v48 = vadd.f32 %v46, 1.0
    %v49 = vadd.f32 %v47, 1.0
    %v50 = vmul.f32 %v48, 0.5
    %v51 = vmul.f32 %v49, 0.5
    %v52 = vmul.f32 %v50, %v42
    %v53 = vmul.f32 %v51, %v43
    %v54 = vrot.slane %v52, 4
    %v55 = vadd.f32 %v52, %v54
    %v56 = vrot.slane %v55, 2
    %v57 = vadd.f32 %v55, %v56
    %v58 = vrot.slane %v57, 1
    %v59 = vadd.f32 %v57, %v58
    %v60 = vrot.slane %v53, 4
    %v61 = vadd.f32 %v53, %v60
    %v62 = vrot.slane %v61, 2
    %v63 = vadd.f32 %v61, %v62
    %v64 = vrot.slane %v63, 1
    %v65 = vadd.f32 %v63, %v64
    %vm68 = vcmask 1041409
    %v69 = vsel %vm68, %v65, %v59
    %71 = vst [vmem:[#allocation7] sm:$0x3] %v69
    %v72 = vmul.f32 %v50, %v50
    %v73 = vmul.f32 %v51, %v51
    %v74 = vrot.slane %v72, 4
    %v75 = vadd.f32 %v72, %v74
    %v76 = vrot.slane %v75, 2
    %v77 = vadd.f32 %v75, %v76
    %v78 = vrot.slane %v77, 1
    %v79 = vadd.f32 %v77, %v78
    %v80 = vrot.slane %v73, 4
    %v81 = vadd.f32 %v73, %v80
    %v82 = vrot.slane %v81, 2
    %v83 = vadd.f32 %v81, %v82
    %v84 = vrot.slane %v83, 1
    %v85 = vadd.f32 %v83, %v84
    %v88 = vsel %vm68, %v85, %v79
    %s90 = scalar_lea.vmem [#allocation7], 2
    %91 = vst [vmem:[%s90] sm:$0x3] %v88
    %v92 = vmul.f32 %v42, %v42
    %v93 = vmul.f32 %v43, %v43
    %v94 = vrot.slane %v92, 4
    %v95 = vadd.f32 %v92, %v94
    %v96 = vrot.slane %v95, 2
    %v97 = vadd.f32 %v95, %v96
    %v98 = vrot.slane %v97, 1
    %v99 = vadd.f32 %v97, %v98
    %v100 = vrot.slane %v93, 4
    %v101 = vadd.f32 %v93, %v100
    %v102 = vrot.slane %v101, 2
    %v103 = vadd.f32 %v101, %v102
    %v104 = vrot.slane %v103, 1
    %v105 = vadd.f32 %v103, %v104
    %v108 = vsel %vm68, %v105, %v99
    %s110 = scalar_lea.vmem [#allocation7], 4
    %111 = vst [vmem:[%s110] sm:$0x3] %v108
    // Predicated region
    $region18: #{tpu_custom_call.1} parent=1 // pred_check
      _
    $region19: #{tpu_custom_call.1} parent=1 // pred_check_branch
      %113 = sbr.rel (0) target = $region21
    $region20: #{tpu_custom_call.1} parent=1 // pred_region
      %s115 = ssub.s32 96, 96
      %116 = vsyncadd [#allocation4], %s115
      %s117 = sshll.u32 [#allocation7], 4
      %s118 = int_to_ptr.vmem [resolvable:$true] %s117
      %123 = dma.vmem_to_hbm [thread:$0]  %s118, 96, %s2, [#allocation4], 32, 32, 2
    $region21: #{tpu_custom_call.1} parent=1 // pred_fallthru
      _
    // Predicated region
    $region22: #{tpu_custom_call.1} parent=1 // pred_check
      _
    $region23: #{tpu_custom_call.1} parent=1 // pred_check_branch
      %125 = sbr.rel (0) target = $region25
    $region24: #{tpu_custom_call.1} parent=1 // pred_region
      %126 = dma.done [#allocation4], 96
    $region25: #{tpu_custom_call.1} parent=1 // pred_fallthru
      _
    %127 = vsyncpa [#allocation3], 1
    %128 = vsyncpa [#allocation6], 1
    %129 = vsyncpa [#allocation4], 1

</llo_original>
